<compile_context>
chip_gen: v7x
topology: tpu7x:2x2x1
jax: 0.10.0
libtpu: 0.0.40
codegen_flags: <defaults>
</compile_context>

<pallas_src>
import jax
import jax.numpy as jnp
from jax.experimental import pallas as pl
from jax.experimental.pallas import tpu as pltpu


# --------------------------------------------------------------------------- #
# Kernel
# --------------------------------------------------------------------------- #
def _double_kernel(x_ref, o_ref):
    x = x_ref[...]
    o_ref[...] = x + x


# --------------------------------------------------------------------------- #
# Tiling helpers
# --------------------------------------------------------------------------- #
_MAX_COLS = 16384                      # keeps even an 8-row block <= 512 KiB f32
_BLOCK_BUDGET_BYTES = 2 * 1024 * 1024  # per-block VMEM; x2 arrays x2 buffers = 8 MiB


def _as_2d(x):
    """Pick a (rows, cols) 2D view for the streaming kernel with minimal relayout.

    Returns None if no reasonable 2D view exists (caller falls back to plain jnp).
    """
    if x.ndim == 0 or x.size == 0:
        return None
    cols = x.shape[-1]
    total = x.size
    if cols % 128 == 0 and cols <= _MAX_COLS:
        # Lane-dense already; collapsing leading dims is free.
        return x.reshape(-1, cols)
    if total % 128 == 0:
        # Lane-dense slab (at most one relayout, still cheaper than pad+slice).
        return x.reshape(-1, 128)
    if cols <= _MAX_COLS:
        # Ragged lane dim: full-extent last-dim block (allowed even if not %128).
        return x.reshape(-1, cols)
    return None


def _pick_tr(rows, cols, itemsize):
    """Largest row-block (multiple of 8) within the per-block VMEM budget."""
    tr = _BLOCK_BUDGET_BYTES // max(1, cols * itemsize)
    tr = max(8, (tr // 8) * 8)
    rows8 = ((rows + 7) // 8) * 8
    return min(tr, rows8)


def _double_pallas(x2d):
    """x2d: (rows, cols) slab; returns x + x elementwise via a tiled Pallas kernel."""
    rows, cols = x2d.shape
    tr = _pick_tr(rows, cols, x2d.dtype.itemsize)
    grid = (pl.cdiv(rows, tr),)
    return pl.pallas_call(
        _double_kernel,
        out_shape=jax.ShapeDtypeStruct((rows, cols), x2d.dtype),
        grid_spec=pltpu.PrefetchScalarGridSpec(
            num_scalar_prefetch=0,
            grid=grid,
            in_specs=[pl.BlockSpec((tr, cols), lambda i: (i, 0))],
            out_specs=pl.BlockSpec((tr, cols), lambda i: (i, 0)),
        ),
        compiler_params=pltpu.CompilerParams(
            dimension_semantics=("parallel",),   # megacore sharding on v7x
            vmem_limit_bytes=32 * 1024 * 1024,   # safe on v5e / v6e / v7x
        ),
    )(x2d)


# --------------------------------------------------------------------------- #
# Model wrapper
# --------------------------------------------------------------------------- #
def _apply_torch_squeeze(y, dimension):
    # Mirrors the PyTorch module exactly: `if self.dimension:` (truthiness), so
    # dimension=0 or None -> squeeze all size-1 dims.
    if dimension:
        # torch.squeeze(t, dim) is a no-op when that dim is not size 1.
        if y.shape[dimension] == 1:
            return jnp.squeeze(y, axis=dimension)
        return y
    return jnp.squeeze(y)


def simple_squeeze_model(x, dimension=None):
    """JAX/Pallas equivalent of SimpleSqueezeModel.forward."""
    x2d = _as_2d(x)
    if x2d is None:
        # Degenerate shape: XLA's fused elementwise add.
        y = x + x
    else:
        y = _double_pallas(x2d).reshape(x.shape)
    return _apply_torch_squeeze(y, dimension)


# --------------------------------------------------------------------------- #
# Test
# --------------------------------------------------------------------------- #
if __name__ == "__main__":
    key = jax.random.PRNGKey(0)
    k1, k2, k3 = jax.random.split(key, 3)

    # A) canonical squeeze-test shape; lane-dense slab path (total % 128 == 0),
    #    dim=None -> remove all size-1 dims.
    xa = jax.random.normal(k1, (1, 4, 1, 16, 16), dtype=jnp.float32)
    ya = jax.block_until_ready(simple_squeeze_model(xa, dimension=None))
    assert ya.shape == (4, 16, 16), ya.shape
    assert jnp.allclose(ya, jnp.squeeze(xa + xa)), "value mismatch (A, dim=None)"

    ya2 = jax.block_until_ready(simple_squeeze_model(xa, dimension=2))
    assert ya2.shape == (1, 4, 16, 16), ya2.shape
    assert jnp.allclose(ya2, jnp.squeeze(xa + xa, axis=2)), "value mismatch (A, dim=2)"

    # B) lane-dense last dim (cols=128): leading dims collapse for free.
    xb = jax.random.normal(k2, (2, 1, 8, 128), dtype=jnp.float32)
    yb = jax.block_until_ready(simple_squeeze_model(xb, dimension=1))
    assert yb.shape == (2, 8, 128), yb.shape
    assert jnp.allclose(yb, jnp.squeeze(xb + xb, axis=1)), "value mismatch (B, dim=1)"

    # C) ragged lane dim (cols=20, total not %128): full-extent lane block path;
    #    squeeze of a non-size-1 dim is a no-op.
    xc = jax.random.normal(k3, (9, 1, 20), dtype=jnp.float32)
    yc = jax.block_until_ready(simple_squeeze_model(xc, dimension=2))
    assert yc.shape == (9, 1, 20), yc.shape
    assert jnp.allclose(yc, xc + xc), "value mismatch (C, dim=2 no-op)"

    print("KERNEL_OK")
</pallas_src>

<mosaic_0001>
module attributes {stable_mosaic.version = 11 : i64} {
  func.func @_double_kernel(%arg0: i32, %arg1: memref<8x128xf32, #tpu.memory_space<vmem>>, %arg2: memref<8x128xf32, #tpu.memory_space<vmem>>) attributes {dimension_semantics = [#tpu.dimension_semantics<parallel>], iteration_bounds = array<i64: 1>, scalar_prefetch = 0 : i64, scratch_operands = 0 : i64, tpu.core_type = #tpu.core_type<tc>, window_params = [{transform_indices = @transform_0, window_bounds = array<i64: 8, 128>}, {transform_indices = @transform_1, window_bounds = array<i64: 8, 128>}]} {
    %c0 = arith.constant 0 : index
    %c0_0 = arith.constant 0 : index
    %0 = vector.load %arg1[%c0, %c0_0] : memref<8x128xf32, #tpu.memory_space<vmem>>, vector<8x128xf32>
    %1 = arith.addf %0, %0 : vector<8x128xf32>
    %c0_1 = arith.constant 0 : index
    %c0_2 = arith.constant 0 : index
    %2 = vector.load %arg2[%c0_1, %c0_2] : memref<8x128xf32, #tpu.memory_space<vmem>>, vector<8x128xf32>
    tpu.vector_store %arg2[%c0_1, %c0_2], %1 {strides = array<i32>} : memref<8x128xf32, #tpu.memory_space<vmem>>, vector<8x128xf32>,
    return
  }
  func.func @transform_0(%arg0: i32) -> (i32, i32) {
    %c0_i32 = arith.constant 0 : i32
    %c0_i32_0 = arith.constant 0 : i32
    return %arg0, %c0_i32 : i32, i32
  }
  func.func @transform_1(%arg0: i32) -> (i32, i32) {
    %c0_i32 = arith.constant 0 : i32
    %c0_i32_0 = arith.constant 0 : i32
    return %arg0, %c0_i32 : i32, i32
  }
}

</mosaic_0001>

<llo_original>
// kernel: tpu_custom_call.1
$region0: #{tpu_custom_call.1}
  #allocation0 [shape = 'u32[]', space=smem, size = 0x4, offset = 0x4, fixed_abs, tag = 'smem constant byte address 0x4 - core index']
  #allocation1 [shape = 'u32[144,128]{1,0:T(1,128)}', space=vmem, size = 0x12000, scoped, tag = 'internal scratch']
  %s0 = inlined_call_operand.hbm [shape: f32[8,128], index: 0, kind: input, shape index: {}]
  %s1 = inlined_call_operand.hbm [shape: f32[8,128], index: 1, kind: output, shape index: {}]
  %s2 = sld [smem:[#allocation0]]
  $region18: #{tpu_custom_call.1} parent=0
    _
  %s4 = ssub.s32 1, %s2
  %s5 = scalar_select 0, %s4, %s2
  $region1: #{tpu_custom_call.1} parent=0
    #allocation2 [shape = 'u8[4096]{0}', space=vmem, size = 0x1000, scoped, tag = 'input window, operand 0, single buffered']
    #allocation3 [shape = 's32[1]{0}', space=sflag, size = 0x4, scoped, tag = 'scoped memory for tpu_custom_call.1']
    #allocation4 [shape = 's32[1]{0}', space=sflag, size = 0x4, scoped, tag = 'scoped memory for tpu_custom_call.1']
    #allocation5 [shape = 'u8[4096]{0}', space=vmem, size = 0x1000, scoped, tag = 'output window, operand 0, single buffered']
    %6 = vsyncpa [#allocation3], 0
    %7 = vsyncpa [#allocation4], 0
    // Predicated region
    $region2: #{tpu_custom_call.1} parent=1 // pred_check
      _
    $region3: #{tpu_custom_call.1} parent=1 // pred_check_branch
      %9 = sbr.rel (0) target = $region5
    $region4: #{tpu_custom_call.1} parent=1 // pred_region
      %s11 = ssub.s32 128, 128
      %12 = vsyncadd [#allocation3], %s11
      %s14 = sshll.u32 [#allocation2], 4
      %s15 = int_to_ptr.vmem [resolvable:$true] %s14
      %17 = dma.hbm_to_vmem [thread:$0]  %s0, 128, %s15, [#allocation3]
    $region5: #{tpu_custom_call.1} parent=1 // pred_fallthru
      _
    // Predicated region
    $region6: #{tpu_custom_call.1} parent=1 // pred_check
      _
    $region7: #{tpu_custom_call.1} parent=1 // pred_check_branch
      %19 = sbr.rel (0) target = $region9
    $region8: #{tpu_custom_call.1} parent=1 // pred_region
      %20 = dma.done [#allocation3], 128
    $region9: #{tpu_custom_call.1} parent=1 // pred_fallthru
      _
    %v21 = vld [vmem:[#allocation2] sm:$0xff]
    %v22 = vadd.f32 %v21, %v21
    %23 = vst [vmem:[#allocation5] sm:$0xff] %v22
    // Predicated region
    $region10: #{tpu_custom_call.1} parent=1 // pred_check
      _
    $region11: #{tpu_custom_call.1} parent=1 // pred_check_branch
      %25 = sbr.rel (0) target = $region13
    $region12: #{tpu_custom_call.1} parent=1 // pred_region
      %s27 = ssub.s32 128, 128
      %28 = vsyncadd [#allocation4], %s27
      %s30 = sshll.u32 [#allocation5], 4
      %s31 = int_to_ptr.vmem [resolvable:$true] %s30
      %33 = dma.vmem_to_hbm [thread:$0]  %s31, 128, %s1, [#allocation4]
    $region13: #{tpu_custom_call.1} parent=1 // pred_fallthru
      _
    // Predicated region
    $region14: #{tpu_custom_call.1} parent=1 // pred_check
      _
    $region15: #{tpu_custom_call.1} parent=1 // pred_check_branch
      %35 = sbr.rel (0) target = $region17
    $region16: #{tpu_custom_call.1} parent=1 // pred_region
      %36 = dma.done [#allocation4], 128
    $region17: #{tpu_custom_call.1} parent=1 // pred_fallthru
      _
    %37 = vsyncpa [#allocation3], 1
    %38 = vsyncpa [#allocation4], 1

</llo_original>
